<compile_context>
chip_gen: v6e
topology: v6e:2x2x1
jax: 0.10.0
libtpu: 0.0.40
codegen_flags: <defaults>
</compile_context>

<pallas_src>
import math

import jax
import jax.numpy as jnp
from jax.experimental import pallas as pl
from jax.experimental.pallas import tpu as pltpu

_LANES = 128


def _fold_lanes(x):
    """(rows, m*128) -> (rows, 128) by pairwise halving adds (m power of 2).

    Slices sit on 128-lane boundaries, so this lowers to plain vreg adds on
    the VPU -- no XLU lane reduction per grid step."""
    m = x.shape[1] // _LANES
    while m > 1:
        m //= 2
        x = x[:, : m * _LANES] + x[:, m * _LANES:]
    return x


def _make_mix_loss_kernel(rows, tile_d, cols, n_inner, needs_mask, hard_target):
    def kernel(pred_ref, targ_ref, inter_ref, denom_ref, ll_ref):
        i = pl.program_id(0)
        k = pl.program_id(1)

        @pl.when(k == 0)
        def _():
            inter_ref[...] = jnp.zeros_like(inter_ref)
            denom_ref[...] = jnp.zeros_like(denom_ref)
            ll_ref[...] = jnp.zeros_like(ll_ref)

        p = pred_ref[...].astype(jnp.float32)
        t = targ_ref[...].astype(jnp.float32)

        if needs_mask:
            # Logical start column of this tile.  (The index_map clamps the
            # DMA so it never reads past the array; here we zero every lane
            # that is logically out of range, including whole duplicate
            # tiles produced by the clamp.)
            start = (i * n_inner + k) * tile_d
            lane = jax.lax.broadcasted_iota(jnp.int32, (rows, tile_d), 1)
            valid = (start + lane) < cols
            p = jnp.where(valid, p, 0.0)
            t = jnp.where(valid, t, 0.0)

        pt = p * t                                    # reused for dice inter

        if hard_target:
            # For t in {0,1}: t*log(p) + (1-t)*log(1-p) == log(where(t, p, 1-p))
            q = jnp.where(t >= 0.5, p, 1.0 - p)
            ll = jnp.maximum(jnp.log(q), -100.0)
        else:
            # Clamp BEFORE multiplying by t / (1-t) (avoids 0 * -inf).
            log_p = jnp.maximum(jnp.log(p), -100.0)
            log_1mp = jnp.maximum(jnp.log1p(-p), -100.0)
            ll = log_1mp + t * (log_p - log_1mp)

        inter_ref[...] += _fold_lanes(pt)
        denom_ref[...] += _fold_lanes(p + t)
        ll_ref[...] += _fold_lanes(ll)

    return kernel


def mix_loss(pred, target, alpha=1.0, beta=1.0, *, hard_target=False,
             pair_budget_bytes=8 << 20):
    """Scalar f32 loss = alpha * BCE(pred, target) + beta * DiceLoss.

    `hard_target=True` enables the single-log BCE path; only valid when
    `target` is a hard {0,1} mask (PyTorch BCE also accepts soft targets,
    hence the default False)."""
    N = target.shape[0]
    smooth = 1.0
    D = math.prod(pred.shape[1:])

    pred2 = pred.reshape(N, D)                       # contiguous reshape: free
    targ2 = target.reshape(N, D)
    if not jnp.issubdtype(targ2.dtype, jnp.floating):
        # Keep the mask narrow in HBM; bf16 is exact for 0/1 masks.
        targ2 = targ2.astype(jnp.bfloat16)

    # Sublane packing: fold as much of D as possible onto the sublane axis so
    # all 8 sublanes of each vreg carry data.  Row-major contiguous reshape
    # => no HBM copy, and every packed row stays inside one image.
    sub = 8 if D % 8 == 0 else 4 if D % 4 == 0 else 2 if D % 2 == 0 else 1
    rows = N * sub
    cols = D // sub
    pred2 = pred2.reshape(rows, cols)
    targ2 = targ2.reshape(rows, cols)

    # Lane-tile size: largest power-of-two number of 128-lane chunks whose
    # (pred, target) block pair fits in ~pair_budget_bytes.  Double-buffered
    # inputs (2x the pair) stay well inside the explicit VMEM limit below.
    # TODO(synk): for very large N (rows >> 8) block the rows axis on the
    # parallel grid dimension instead of shrinking tile_d.
    bytes_per_pair = pred2.dtype.itemsize + targ2.dtype.itemsize
    chunks_needed = pl.cdiv(cols, _LANES)
    budget_chunks = max(1, pair_budget_bytes // (rows * _LANES * bytes_per_pair))
    tile_chunks = 1
    while tile_chunks * 2 <= min(budget_chunks, chunks_needed):
        tile_chunks *= 2
    tile_d = tile_chunks * _LANES

    total_tiles = pl.cdiv(cols, tile_d)
    # Always split the lane range in two when possible so both v7x TensorCores
    # get work even for odd tile counts (harmless serial split on v5e/v6e).
    n_par = 2 if total_tiles >= 2 else 1
    n_inner = pl.cdiv(total_tiles, n_par)
    needs_mask = (n_par * n_inner * tile_d) != cols

    kernel = _make_mix_loss_kernel(rows, tile_d, cols, n_inner, needs_mask,
                                   hard_target)

    def in_map(i, k):
        # Clamp so the DMA never runs past the array; logically out-of-range
        # duplicate tiles are zeroed by the in-kernel mask.
        return (0, jnp.minimum(i * n_inner + k, total_tiles - 1))

    in_spec = pl.BlockSpec((rows, tile_d), in_map)
    out_sds = jax.ShapeDtypeStruct((n_par, rows, _LANES), jnp.float32)
    out_spec = pl.BlockSpec((None, rows, _LANES), lambda i, k: (i, 0, 0))

    n_elems = rows * cols
    cost = pl.CostEstimate(
        flops=12 * n_elems,
        transcendentals=(1 if hard_target else 2) * n_elems,
        bytes_accessed=n_elems * bytes_per_pair + 3 * n_par * rows * _LANES * 4,
    )

    inter, denom, ll = pl.pallas_call(
        kernel,
        out_shape=(out_sds, out_sds, out_sds),
        grid_spec=pltpu.PrefetchScalarGridSpec(
            num_scalar_prefetch=0,
            grid=(n_par, n_inner),
            in_specs=[in_spec, in_spec],
            out_specs=(out_spec, out_spec, out_spec),
        ),
        compiler_params=pltpu.CompilerParams(
            dimension_semantics=("parallel", "arbitrary"),
            vmem_limit_bytes=40 << 20,
        ),
        cost_estimate=cost,
    )(pred2, targ2)

    # Tiny final combine (O(N*128) flops) in plain JAX.
    inter_n = inter.sum(axis=(0, 2)).reshape(N, sub).sum(axis=1)    # (N,)
    denom_n = denom.sum(axis=(0, 2)).reshape(N, sub).sum(axis=1)    # (N,)
    dice = 2.0 * (inter_n + smooth) / (denom_n + smooth)
    dice_loss = 1.0 - jnp.sum(dice) / N
    bce_loss = -jnp.sum(ll) / (N * D)               # normalize by true count
    return alpha * bce_loss + beta * dice_loss


def _ref_mix_loss(pred, target, alpha=1.0, beta=1.0):
    """Pure-JAX reference mirroring the PyTorch module."""
    N = target.shape[0]
    smooth = 1.0
    p = pred.reshape(N, -1).astype(jnp.float32)
    t = target.reshape(N, -1).astype(jnp.float32)
    inter = jnp.sum(p * t, axis=1)
    dice = 2.0 * (inter + smooth) / (jnp.sum(p, axis=1) + jnp.sum(t, axis=1) + smooth)
    dice_loss = 1.0 - jnp.sum(dice) / N
    bce = -jnp.mean(t * jnp.maximum(jnp.log(p), -100.0)
                    + (1.0 - t) * jnp.maximum(jnp.log(1.0 - p), -100.0))
    return alpha * bce + beta * dice_loss


if __name__ == "__main__":
    key = jax.random.PRNGKey(0)
    k1, k2, k3, k4 = jax.random.split(key, 4)

    # Main case (module's intended use): pred in (0,1), target a 0/1 mask.
    N, C, H, W = 2, 4, 16, 16
    pred = jax.nn.sigmoid(jax.random.normal(k1, (N, C, H, W), jnp.float32))
    target = (jax.random.uniform(k2, (N, C, H, W)) > 0.5).astype(jnp.float32)

    out = jax.block_until_ready(mix_loss(pred, target, alpha=1.0, beta=1.0))
    ref = _ref_mix_loss(pred, target, alpha=1.0, beta=1.0)
    assert jnp.allclose(out, ref, rtol=1e-5, atol=1e-5), (out, ref)

    # Optional single-log BCE path for hard {0,1} masks (v7x EUP relief).
    out_hard = jax.block_until_ready(mix_loss(pred, target, hard_target=True))
    assert jnp.allclose(out_hard, ref, rtol=1e-4, atol=1e-4), (out_hard, ref)

    # Ragged / odd-tile-count case: exercises the in-kernel lane mask and the
    # two-way parallel split with a clamped index_map (D = 693, no packing).
    shape2 = (2, 3, 33, 7)
    pred2 = jax.nn.sigmoid(jax.random.normal(k3, shape2, jnp.float32))
    target2 = (jax.random.uniform(k4, shape2) > 0.5).astype(jnp.float32)
    out2 = jax.block_until_ready(mix_loss(pred2, target2))
    ref2 = _ref_mix_loss(pred2, target2)
    assert jnp.allclose(out2, ref2, rtol=1e-5, atol=1e-5), (out2, ref2)

    print("KERNEL_OK")
</pallas_src>

<mosaic_0001>
module attributes {stable_mosaic.version = 11 : i64} {
  func.func @kernel(%arg0: i32, %arg1: i32, %arg2: memref<16x128xf32, #tpu.memory_space<vmem>>, %arg3: memref<16x128xf32, #tpu.memory_space<vmem>>, %arg4: memref<1x16x128xf32, #tpu.memory_space<vmem>>, %arg5: memref<1x16x128xf32, #tpu.memory_space<vmem>>, %arg6: memref<1x16x128xf32, #tpu.memory_space<vmem>>) attributes {dimension_semantics = [#tpu.dimension_semantics<parallel>, #tpu.dimension_semantics<arbitrary>], iteration_bounds = array<i64: 1, 1>, scalar_prefetch = 0 : i64, scratch_operands = 0 : i64, tpu.core_type = #tpu.core_type<tc>, window_params = [{transform_indices = @transform_0, window_bounds = array<i64: 16, 128>}, {transform_indices = @transform_1, window_bounds = array<i64: 16, 128>}, {transform_indices = @transform_2, window_bounds = array<i64: 1, 16, 128>}, {transform_indices = @transform_3, window_bounds = array<i64: 1, 16, 128>}, {transform_indices = @transform_4, window_bounds = array<i64: 1, 16, 128>}]} {
    %c0_i32 = arith.constant 0 : i32
    %0 = arith.cmpi eq, %arg1, %c0_i32 : i32
    %1 = arith.extui %0 : i1 to i32
    %c0_i32_0 = arith.constant 0 : i32
    %2 = arith.cmpi ne, %1, %c0_i32_0 : i32
    scf.if %2 {
      %cst_24 = arith.constant 0.000000e+00 : f32
      %36 = vector.broadcast %cst_24 : f32 to vector<16x128xf32>
      %c0_25 = arith.constant 0 : index
      %c0_26 = arith.constant 0 : index
      %c0_27 = arith.constant 0 : index
      %37 = vector.load %arg4[%c0_25, %c0_26, %c0_27] : memref<1x16x128xf32, #tpu.memory_space<vmem>>, vector<1x16x128xf32>
      %38 = vector.shape_cast %37 : vector<1x16x128xf32> to vector<16x128xf32>
      %39 = vector.shape_cast %36 : vector<16x128xf32> to vector<1x16x128xf32>
      tpu.vector_store %arg4[%c0_25, %c0_26, %c0_27], %39 {strides = array<i32>} : memref<1x16x128xf32, #tpu.memory_space<vmem>>, vector<1x16x128xf32>,
      %cst_28 = arith.constant 0.000000e+00 : f32
      %40 = vector.broadcast %cst_28 : f32 to vector<16x128xf32>
      %c0_29 = arith.constant 0 : index
      %c0_30 = arith.constant 0 : index
      %c0_31 = arith.constant 0 : index
      %41 = vector.load %arg5[%c0_29, %c0_30, %c0_31] : memref<1x16x128xf32, #tpu.memory_space<vmem>>, vector<1x16x128xf32>
      %42 = vector.shape_cast %41 : vector<1x16x128xf32> to vector<16x128xf32>
      %43 = vector.shape_cast %40 : vector<16x128xf32> to vector<1x16x128xf32>
      tpu.vector_store %arg5[%c0_29, %c0_30, %c0_31], %43 {strides = array<i32>} : memref<1x16x128xf32, #tpu.memory_space<vmem>>, vector<1x16x128xf32>,
      %cst_32 = arith.constant 0.000000e+00 : f32
      %44 = vector.broadcast %cst_32 : f32 to vector<16x128xf32>
      %c0_33 = arith.constant 0 : index
      %c0_34 = arith.constant 0 : index
      %c0_35 = arith.constant 0 : index
      %45 = vector.load %arg6[%c0_33, %c0_34, %c0_35] : memref<1x16x128xf32, #tpu.memory_space<vmem>>, vector<1x16x128xf32>
      %46 = vector.shape_cast %45 : vector<1x16x128xf32> to vector<16x128xf32>
      %47 = vector.shape_cast %44 : vector<16x128xf32> to vector<1x16x128xf32>
      tpu.vector_store %arg6[%c0_33, %c0_34, %c0_35], %47 {strides = array<i32>} : memref<1x16x128xf32, #tpu.memory_space<vmem>>, vector<1x16x128xf32>,
    } else {
    }
    %c0 = arith.constant 0 : index
    %c0_1 = arith.constant 0 : index
    %3 = vector.load %arg2[%c0, %c0_1] : memref<16x128xf32, #tpu.memory_space<vmem>>, vector<16x128xf32>
    %c0_2 = arith.constant 0 : index
    %c0_3 = arith.constant 0 : index
    %4 = vector.load %arg3[%c0_2, %c0_3] : memref<16x128xf32, #tpu.memory_space<vmem>>, vector<16x128xf32>
    %5 = arith.mulf %3, %4 : vector<16x128xf32>
    %6 = math.log %3 : vector<16x128xf32>
    %cst = arith.constant -1.000000e+02 : f32
    %7 = vector.broadcast %cst : f32 to vector<16x128xf32>
    %8 = arith.maximumf %6, %7 : vector<16x128xf32>
    %cst_4 = arith.constant 0.000000e+00 : f32
    %9 = vector.broadcast %cst_4 : f32 to vector<16x128xf32>
    %10 = arith.subf %9, %3 : vector<16x128xf32>
    %11 = math.log1p %10 : vector<16x128xf32>
    %cst_5 = arith.constant -1.000000e+02 : f32
    %12 = vector.broadcast %cst_5 : f32 to vector<16x128xf32>
    %13 = arith.maximumf %11, %12 : vector<16x128xf32>
    %14 = arith.subf %8, %13 : vector<16x128xf32>
    %15 = arith.mulf %4, %14 : vector<16x128xf32>
    %16 = arith.addf %13, %15 : vector<16x128xf32>
    %c0_6 = arith.constant 0 : index
    %c0_7 = arith.constant 0 : index
    %c0_8 = arith.constant 0 : index
    %17 = vector.load %arg4[%c0_6, %c0_7, %c0_8] : memref<1x16x128xf32, #tpu.memory_space<vmem>>, vector<1x16x128xf32>
    %18 = vector.shape_cast %17 : vector<1x16x128xf32> to vector<16x128xf32>
    %19 = arith.addf %18, %5 : vector<16x128xf32>
    %c0_9 = arith.constant 0 : index
    %c0_10 = arith.constant 0 : index
    %c0_11 = arith.constant 0 : index
    %20 = vector.load %arg4[%c0_9, %c0_10, %c0_11] : memref<1x16x128xf32, #tpu.memory_space<vmem>>, vector<1x16x128xf32>
    %21 = vector.shape_cast %20 : vector<1x16x128xf32> to vector<16x128xf32>
    %22 = vector.shape_cast %19 : vector<16x128xf32> to vector<1x16x128xf32>
    tpu.vector_store %arg4[%c0_9, %c0_10, %c0_11], %22 {strides = array<i32>} : memref<1x16x128xf32, #tpu.memory_space<vmem>>, vector<1x16x128xf32>,
    %c0_12 = arith.constant 0 : index
    %c0_13 = arith.constant 0 : index
    %c0_14 = arith.constant 0 : index
    %23 = vector.load %arg5[%c0_12, %c0_13, %c0_14] : memref<1x16x128xf32, #tpu.memory_space<vmem>>, vector<1x16x128xf32>
    %24 = vector.shape_cast %23 : vector<1x16x128xf32> to vector<16x128xf32>
    %25 = arith.addf %3, %4 : vector<16x128xf32>
    %26 = arith.addf %24, %25 : vector<16x128xf32>
    %c0_15 = arith.constant 0 : index
    %c0_16 = arith.constant 0 : index
    %c0_17 = arith.constant 0 : index
    %27 = vector.load %arg5[%c0_15, %c0_16, %c0_17] : memref<1x16x128xf32, #tpu.memory_space<vmem>>, vector<1x16x128xf32>
    %28 = vector.shape_cast %27 : vector<1x16x128xf32> to vector<16x128xf32>
    %29 = vector.shape_cast %26 : vector<16x128xf32> to vector<1x16x128xf32>
    tpu.vector_store %arg5[%c0_15, %c0_16, %c0_17], %29 {strides = array<i32>} : memref<1x16x128xf32, #tpu.memory_space<vmem>>, vector<1x16x128xf32>,
    %c0_18 = arith.constant 0 : index
    %c0_19 = arith.constant 0 : index
    %c0_20 = arith.constant 0 : index
    %30 = vector.load %arg6[%c0_18, %c0_19, %c0_20] : memref<1x16x128xf32, #tpu.memory_space<vmem>>, vector<1x16x128xf32>
    %31 = vector.shape_cast %30 : vector<1x16x128xf32> to vector<16x128xf32>
    %32 = arith.addf %31, %16 : vector<16x128xf32>
    %c0_21 = arith.constant 0 : index
    %c0_22 = arith.constant 0 : index
    %c0_23 = arith.constant 0 : index
    %33 = vector.load %arg6[%c0_21, %c0_22, %c0_23] : memref<1x16x128xf32, #tpu.memory_space<vmem>>, vector<1x16x128xf32>
    %34 = vector.shape_cast %33 : vector<1x16x128xf32> to vector<16x128xf32>
    %35 = vector.shape_cast %32 : vector<16x128xf32> to vector<1x16x128xf32>
    tpu.vector_store %arg6[%c0_21, %c0_22, %c0_23], %35 {strides = array<i32>} : memref<1x16x128xf32, #tpu.memory_space<vmem>>, vector<1x16x128xf32>,
    return
  }
  func.func @transform_0(%arg0: i32, %arg1: i32) -> (i32, i32) {
    %c1_i32 = arith.constant 1 : i32
    %0 = arith.muli %arg0, %c1_i32 : i32
    %1 = arith.addi %0, %arg1 : i32
    %c0_i32 = arith.constant 0 : i32
    %2 = arith.minsi %1, %c0_i32 : i32
    %c0_i32_0 = arith.constant 0 : i32
    %c0_i32_1 = arith.constant 0 : i32
    return %c0_i32_0, %2 : i32, i32
  }
  func.func @transform_1(%arg0: i32, %arg1: i32) -> (i32, i32) {
    %c1_i32 = arith.constant 1 : i32
    %0 = arith.muli %arg0, %c1_i32 : i32
    %1 = arith.addi %0, %arg1 : i32
    %c0_i32 = arith.constant 0 : i32
    %2 = arith.minsi %1, %c0_i32 : i32
    %c0_i32_0 = arith.constant 0 : i32
    %c0_i32_1 = arith.constant 0 : i32
    return %c0_i32_0, %2 : i32, i32
  }
  func.func @transform_2(%arg0: i32, %arg1: i32) -> (i32, i32, i32) {
    %c0_i32 = arith.constant 0 : i32
    %c0_i32_0 = arith.constant 0 : i32
    %c0_i32_1 = arith.constant 0 : i32
    return %arg0, %c0_i32, %c0_i32_0 : i32, i32, i32
  }
  func.func @transform_3(%arg0: i32, %arg1: i32) -> (i32, i32, i32) {
    %c0_i32 = arith.constant 0 : i32
    %c0_i32_0 = arith.constant 0 : i32
    %c0_i32_1 = arith.constant 0 : i32
    return %arg0, %c0_i32, %c0_i32_0 : i32, i32, i32
  }
  func.func @transform_4(%arg0: i32, %arg1: i32) -> (i32, i32, i32) {
    %c0_i32 = arith.constant 0 : i32
    %c0_i32_0 = arith.constant 0 : i32
    %c0_i32_1 = arith.constant 0 : i32
    return %arg0, %c0_i32, %c0_i32_0 : i32, i32, i32
  }
}

</mosaic_0001>

<llo_original>
// kernel: tpu_custom_call.1
$region0: #{tpu_custom_call.1}
  #allocation0 [shape = 'u32[]', space=smem, size = 0x4, offset = 0x4, fixed_abs, tag = 'smem constant byte address 0x4 - core index']
  #allocation1 [shape = 'u32[144,128]{1,0:T(1,128)}', space=vmem, size = 0x12000, scoped, tag = 'internal scratch']
  %s0 = inlined_call_operand.hbm [shape: f32[16,128], index: 0, kind: input, shape index: {}]
  %s1 = inlined_call_operand.hbm [shape: f32[16,128], index: 1, kind: input, shape index: {}]
  %s2 = inlined_call_operand.hbm [shape: f32[1,16,128], index: 2, kind: output, shape index: {0}]
  %s3 = inlined_call_operand.hbm [shape: f32[1,16,128], index: 3, kind: output, shape index: {1}]
  %s4 = inlined_call_operand.hbm [shape: f32[1,16,128], index: 4, kind: output, shape index: {2}]
  %5 = xla_tuple %s2, %s3, %s4
  %s6 = sld [smem:[#allocation0]]
  $region46: #{tpu_custom_call.1} parent=0
    _
  %s8 = ssub.s32 1, %s6
  %s9 = scalar_select 0, %s8, %s6
  $region1: #{tpu_custom_call.1} parent=0
    #allocation2 [shape = 'u8[8192]{0}', space=vmem, size = 0x2000, scoped, tag = 'input window, operand 0, single buffered']
    #allocation3 [shape = 's32[1]{0}', space=sflag, size = 0x4, scoped, tag = 'scoped memory for tpu_custom_call.1']
    #allocation4 [shape = 's32[1]{0}', space=sflag, size = 0x4, scoped, tag = 'scoped memory for tpu_custom_call.1']
    #allocation5 [shape = 'u8[8192]{0}', space=vmem, size = 0x2000, scoped, tag = 'input window, operand 1, single buffered']
    #allocation6 [shape = 's32[1]{0}', space=sflag, size = 0x4, scoped, tag = 'scoped memory for tpu_custom_call.1']
    #allocation7 [shape = 'u8[8192]{0}', space=vmem, size = 0x2000, scoped, tag = 'output window, operand 0, single buffered']
    #allocation8 [shape = 'u8[8192]{0}', space=vmem, size = 0x2000, scoped, tag = 'output window, operand 1, single buffered']
    #allocation9 [shape = 's32[1]{0}', space=sflag, size = 0x4, scoped, tag = 'scoped memory for tpu_custom_call.1']
    #allocation10 [shape = 'u8[8192]{0}', space=vmem, size = 0x2000, scoped, tag = 'output window, operand 2, single buffered']
    %10 = vsyncpa [#allocation3], 0
    %11 = vsyncpa [#allocation6], 0
    %12 = vsyncpa [#allocation4], 0
    %13 = vsyncpa [#allocation9], 0
    // Predicated region
    $region2: #{tpu_custom_call.1} parent=1 // pred_check
      _
    $region3: #{tpu_custom_call.1} parent=1 // pred_check_branch
      %15 = sbr.rel (0) target = $region5
    $region4: #{tpu_custom_call.1} parent=1 // pred_region
      %s16 = sadd.s32 0, 0
      %p17 = scmp.lt.s32.totalorder %s16, 0
      %s18 = scalar_select %p17, %s16, 0
      %s20 = ssub.s32 256, 256
      %21 = vsyncadd [#allocation3], %s20
      %s22 = smul.addr %s18, 128
      %s23 = scalar_lea.hbm %s0, %s22
      %s24 = sshll.u32 [#allocation2], 4
      %s25 = int_to_ptr.vmem [resolvable:$true] %s24
      %30 = dma.hbm_to_vmem [thread:$0]  %s23, 256, %s25, [#allocation3], 128, 128, 8
    $region5: #{tpu_custom_call.1} parent=1 // pred_fallthru
      _
    // Predicated region
    $region6: #{tpu_custom_call.1} parent=1 // pred_check
      _
    $region7: #{tpu_custom_call.1} parent=1 // pred_check_branch
      %32 = sbr.rel (0) target = $region9
    $region8: #{tpu_custom_call.1} parent=1 // pred_region
      %s33 = sadd.s32 0, 0
      %p34 = scmp.lt.s32.totalorder %s33, 0
      %s35 = scalar_select %p34, %s33, 0
      %s37 = ssub.s32 256, 256
      %38 = vsyncadd [#allocation6], %s37
      %s39 = smul.addr %s35, 128
      %s40 = scalar_lea.hbm %s1, %s39
      %s41 = sshll.u32 [#allocation5], 4
      %s42 = int_to_ptr.vmem [resolvable:$true] %s41
      %47 = dma.hbm_to_vmem [thread:$0]  %s40, 256, %s42, [#allocation6], 128, 128, 8
    $region9: #{tpu_custom_call.1} parent=1 // pred_fallthru
      _
    // Predicated region
    $region10: #{tpu_custom_call.1} parent=1 // pred_check
      _
    $region11: #{tpu_custom_call.1} parent=1 // pred_check_branch
      %49 = sbr.rel (0) target = $region13
    $region12: #{tpu_custom_call.1} parent=1 // pred_region
      %50 = dma.done [#allocation3], 256
    $region13: #{tpu_custom_call.1} parent=1 // pred_fallthru
      _
    // Predicated region
    $region14: #{tpu_custom_call.1} parent=1 // pred_check
      _
    $region15: #{tpu_custom_call.1} parent=1 // pred_check_branch
      %52 = sbr.rel (0) target = $region17
    $region16: #{tpu_custom_call.1} parent=1 // pred_region
      %53 = dma.done [#allocation6], 256
    $region17: #{tpu_custom_call.1} parent=1 // pred_fallthru
      _
    %s54 = sadd.s32 0, 0
    %p55 = scmp.lt.s32.totalorder %s54, 0
    %s56 = scalar_select %p55, %s54, 0
    %s57 = sadd.s32 0, 0
    %p58 = scmp.lt.s32.totalorder %s57, 0
    %s59 = scalar_select %p58, %s57, 0
    %p60 = scmp.eq.s32.totalorder 0, 0
    // Predicated region
    $region18: #{tpu_custom_call.1} parent=1 // pred_check
      %p61 = pneg %p60
    $region19: #{tpu_custom_call.1} parent=1 // pred_check_branch
      %63 = sbr.rel (%p61) target = $region21
    $region20: #{tpu_custom_call.1} parent=1 // pred_region
      %64 = vst [vmem:[#allocation7] sm:$0xff] 0.0
      %65 = vst [vmem:[#allocation7 + $0x8] sm:$0xff] 0.0
      %66 = vst [vmem:[#allocation8] sm:$0xff] 0.0
      %67 = vst [vmem:[#allocation8 + $0x8] sm:$0xff] 0.0
      %68 = vst [vmem:[#allocation10] sm:$0xff] 0.0
      %69 = vst [vmem:[#allocation10 + $0x8] sm:$0xff] 0.0
    $region21: #{tpu_custom_call.1} parent=1 // pred_fallthru
      _
    %v70 = vld [vmem:[#allocation2] sm:$0xff]
    %v71 = vld [vmem:[#allocation2 + $0x8] sm:$0xff]
    %v72 = vld [vmem:[#allocation5] sm:$0xff]
    %v73 = vld [vmem:[#allocation5 + $0x8] sm:$0xff]
    %v74 = vmul.f32 %v70, %v72
    %v75 = vmul.f32 %v71, %v73
    %v76 = vlog2.pop %v70
    %v77 = vmul.f32 %v76, 0.6931472
    %v78 = vlog2.pop %v71
    %v79 = vmul.f32 %v78, 0.6931472
    %v80 = vmax.f32 %v77, -100.0
    %v81 = vmax.f32 %v79, -100.0
    %v82 = vsub.f32 0.0, %v70
    %v83 = vsub.f32 0.0, %v71
    %v84 = vadd.f32 %v82, 1.0
    %v85 = vlog2.pop %v84
    %v86 = vmul.f32 %v85, 0.6931472
    %v87 = vmul.f32 -0.5, %v82
    %v88 = vadd.f32 %v87, 1.0
    %v89 = vmul.f32 %v88, %v82
    %v90 = vand.u32 2147483647, %v82
    %vm91 = vcmp.lt.f32.partialorder %v90, 0.0004427343
    %v92 = vsel %vm91, %v89, %v86
    %v93 = vadd.f32 %v83, 1.0
    %v94 = vlog2.pop %v93
    %v95 = vmul.f32 %v94, 0.6931472
    %v96 = vmul.f32 -0.5, %v83
    %v97 = vadd.f32 %v96, 1.0
    %v98 = vmul.f32 %v97, %v83
    %v99 = vand.u32 2147483647, %v83
    %vm100 = vcmp.lt.f32.partialorder %v99, 0.0004427343
    %v101 = vsel %vm100, %v98, %v95
    %v102 = vmax.f32 %v92, -100.0
    %v103 = vmax.f32 %v101, -100.0
    %v104 = vsub.f32 %v80, %v102
    %v105 = vsub.f32 %v81, %v103
    %v106 = vmul.f32 %v72, %v104
    %v107 = vmul.f32 %v73, %v105
    %v108 = vadd.f32 %v102, %v106
    %v109 = vadd.f32 %v103, %v107
    %v110 = vld [vmem:[#allocation7] sm:$0xff]
    %v111 = vld [vmem:[#allocation7 + $0x8] sm:$0xff]
    %v112 = vadd.f32 %v110, %v74
    %v113 = vadd.f32 %v111, %v75
    %114 = vst [vmem:[#allocation7] sm:$0xff] %v112
    %115 = vst [vmem:[#allocation7 + $0x8] sm:$0xff] %v113
    %v116 = vld [vmem:[#allocation8] sm:$0xff]
    %v117 = vld [vmem:[#allocation8 + $0x8] sm:$0xff]
    %v118 = vadd.f32 %v70, %v72
    %v119 = vadd.f32 %v71, %v73
    %v120 = vadd.f32 %v116, %v118
    %v121 = vadd.f32 %v117, %v119
    %122 = vst [vmem:[#allocation8] sm:$0xff] %v120
    %123 = vst [vmem:[#allocation8 + $0x8] sm:$0xff] %v121
    %v124 = vld [vmem:[#allocation10] sm:$0xff]
    %v125 = vld [vmem:[#allocation10 + $0x8] sm:$0xff]
    %v126 = vadd.f32 %v124, %v108
    %v127 = vadd.f32 %v125, %v109
    %128 = vst [vmem:[#allocation10] sm:$0xff] %v126
    %129 = vst [vmem:[#allocation10 + $0x8] sm:$0xff] %v127
    // Predicated region
    $region22: #{tpu_custom_call.1} parent=1 // pred_check
      _
    $region23: #{tpu_custom_call.1} parent=1 // pred_check_branch
      %131 = sbr.rel (0) target = $region25
    $region24: #{tpu_custom_call.1} parent=1 // pred_region
      %s133 = ssub.s32 256, 256
      %134 = vsyncadd [#allocation4], %s133
      %s135 = sshll.u32 [#allocation7], 4
      %s136 = int_to_ptr.vmem [resolvable:$true] %s135
      %141 = dma.vmem_to_hbm [thread:$0]  %s136, 256, %s2, [#allocation4], 128, 128, 8
    $region25: #{tpu_custom_call.1} parent=1 // pred_fallthru
      _
    // Predicated region
    $region26: #{tpu_custom_call.1} parent=1 // pred_check
      _
    $region27: #{tpu_custom_call.1} parent=1 // pred_check_branch
      %143 = sbr.rel (0) target = $region29
    $region28: #{tpu_custom_call.1} parent=1 // pred_region
      %s145 = ssub.s32 256, 256
      %146 = vsyncadd [#allocation9], %s145
      %s147 = sshll.u32 [#allocation8], 4
      %s148 = int_to_ptr.vmem [resolvable:$true] %s147
      %153 = dma.vmem_to_hbm [thread:$0]  %s148, 256, %s3, [#allocation9], 128, 128, 8
    $region29: #{tpu_custom_call.1} parent=1 // pred_fallthru
      _
    // Predicated region
    $region30: #{tpu_custom_call.1} parent=1 // pred_check
      _
    $region31: #{tpu_custom_call.1} parent=1 // pred_check_branch
      %155 = sbr.rel (0) target = $region33
    $region32: #{tpu_custom_call.1} parent=1 // pred_region
      %s157 = ssub.s32 256, 256
      %158 = vsyncadd [#allocation9], %s157
      %s159 = sshll.u32 [#allocation10], 4
      %s160 = int_to_ptr.vmem [resolvable:$true] %s159
      %165 = dma.vmem_to_hbm [thread:$0]  %s160, 256, %s4, [#allocation9], 128, 128, 8
    $region33: #{tpu_custom_call.1} parent=1 // pred_fallthru
      _
    // Predicated region
    $region34: #{tpu_custom_call.1} parent=1 // pred_check
      _
    $region35: #{tpu_custom_call.1} parent=1 // pred_check_branch
      %167 = sbr.rel (0) target = $region37
    $region36: #{tpu_custom_call.1} parent=1 // pred_region
      %168 = dma.done [#allocation4], 256
    $region37: #{tpu_custom_call.1} parent=1 // pred_fallthru
      _
    // Predicated region
    $region38: #{tpu_custom_call.1} parent=1 // pred_check
      _
    $region39: #{tpu_custom_call.1} parent=1 // pred_check_branch
      %170 = sbr.rel (0) target = $region41
    $region40: #{tpu_custom_call.1} parent=1 // pred_region
      %171 = dma.done [#allocation9], 256
    $region41: #{tpu_custom_call.1} parent=1 // pred_fallthru
      _
    // Predicated region
    $region42: #{tpu_custom_call.1} parent=1 // pred_check
      _
    $region43: #{tpu_custom_call.1} parent=1 // pred_check_branch
      %173 = sbr.rel (0) target = $region45
    $region44: #{tpu_custom_call.1} parent=1 // pred_region
      %174 = dma.done [#allocation9], 256
    $region45: #{tpu_custom_call.1} parent=1 // pred_fallthru
      _
    %175 = vsyncpa [#allocation3], 1
    %176 = vsyncpa [#allocation6], 1
    %177 = vsyncpa [#allocation4], 1
    %178 = vsyncpa [#allocation9], 1

</llo_original>
